<compile_context>
chip_gen: v7x
topology: tpu7x:2x2x1
jax: 0.10.0
libtpu: 0.0.40
codegen_flags: <defaults>
</compile_context>

<pallas_src>
import functools

import jax
import jax.numpy as jnp
from jax.experimental import pallas as pl
from jax.experimental.pallas import tpu as pltpu


def _conv_bn_silu_kernel(x_ref, w_ref, scale_ref, bias_ref, o_ref, *, k, H, W):
    """One grid step computes out[n, :, :, c*C_BLK:(c+1)*C_BLK] (channels-last).

    Refs:
      x_ref     : VMEM (1, H+k-1, W+k-1, Cin)  spatially pre-padded input slab
      w_ref     : VMEM (k*k, Cin, C_BLK)       tap-major conv weights
      scale_ref : VMEM (1, C_BLK)              folded BN scale
      bias_ref  : VMEM (1, C_BLK)              folded BN bias
      o_ref     : VMEM (1, H, W, C_BLK)        output slab
    """
    cin = x_ref.shape[-1]
    cout = o_ref.shape[-1]

    # k*k taps, each an MXU matmul over the channel contraction. The spatial
    # shifts only touch the leading H dim and the sublane W dim (channels-last),
    # so no lane-crossing shifts are generated.
    acc = jnp.zeros((H * W, cout), jnp.float32)
    for i in range(k):
        for j in range(k):
            x_tap = x_ref[0, i:i + H, j:j + W, :].reshape(H * W, cin)
            w_tap = w_ref[i * k + j, :, :]
            acc = acc + jnp.dot(x_tap, w_tap, preferred_element_type=jnp.float32)

    # Folded BatchNorm (eval mode): y = conv * scale + bias (vector FMA).
    y = acc * scale_ref[...] + bias_ref[...]
    # SiLU: y * sigmoid(y); exp and the approximate reciprocal both issue on the
    # EUP slot, leaving the VALU free.
    y = y * pl.reciprocal(1.0 + jnp.exp(-y), approx=True)
    o_ref[0, :, :, :] = y.reshape(H, W, cout).astype(o_ref.dtype)


def _conv_bn_silu(x_nhwc, w_oihw, gamma, beta, run_mean, run_var, *,
                  k, s=1, eps=1e-5, c_blk=128):
    """Conv2d(k, stride=1, pad=k//2, groups=1, bias=False) + BN(eval) + SiLU, NHWC."""
    assert s == 1  # TODO(synk): stride > 1 (cv1 may use s>1 in YOLOv5) not implemented.
    N, H, W, cin = x_nhwc.shape
    cout = w_oihw.shape[0]
    p = k // 2
    Hp, Wp = H + 2 * p, W + 2 * p

    # Plain-JAX glue: spatial zero-pad, BN folding, weight re-layout to tap-major.
    x_pad = jnp.pad(x_nhwc, ((0, 0), (p, p), (p, p), (0, 0)))
    scale = (gamma / jnp.sqrt(run_var + eps)).astype(jnp.float32)
    bias = (beta - run_mean * scale).astype(jnp.float32)
    scale = scale.reshape(1, cout)
    bias = bias.reshape(1, cout)
    # (Cout, Cin, k, k) -> (k*k, Cin, Cout)
    w_km = jnp.transpose(w_oihw, (2, 3, 1, 0)).reshape(k * k, cin, cout)
    w_km = w_km.astype(x_nhwc.dtype)

    c_blk = min(c_blk, cout)
    n_cblk = pl.cdiv(cout, c_blk)

    # Explicit VMEM budget: double-buffered blocks + headroom, kept well under
    # v7x's 64 MiB physical VMEM (v5e/v6e have 128 MiB, so this is safe there too).
    itemsize = jnp.dtype(x_nhwc.dtype).itemsize
    block_bytes = (Hp * Wp * cin * itemsize            # padded input slab
                   + k * k * cin * c_blk * itemsize    # weights
                   + 2 * c_blk * 4                     # BN scale / bias
                   + H * W * c_blk * itemsize)         # output slab
    vmem_limit = int(min(max(2 * block_bytes + (4 << 20), 16 << 20), 48 << 20))

    kernel = functools.partial(_conv_bn_silu_kernel, k=k, H=H, W=W)
    return pl.pallas_call(
        kernel,
        out_shape=jax.ShapeDtypeStruct((N, H, W, cout), x_nhwc.dtype),
        grid=(N, n_cblk),
        in_specs=[
            pl.BlockSpec((1, Hp, Wp, cin), lambda n, c: (n, 0, 0, 0)),
            pl.BlockSpec((k * k, cin, c_blk), lambda n, c: (0, 0, c)),
            pl.BlockSpec((1, c_blk), lambda n, c: (0, c)),
            pl.BlockSpec((1, c_blk), lambda n, c: (0, c)),
        ],
        out_specs=pl.BlockSpec((1, H, W, c_blk), lambda n, c: (n, 0, 0, c)),
        compiler_params=pltpu.CompilerParams(
            dimension_semantics=("parallel", "parallel"),
            vmem_limit_bytes=vmem_limit),
    )(x_pad, w_km, scale, bias)


def ghostconv_forward(x_nchw, params, *, k=1, s=1, eps=1e-5):
    """GhostConv forward. x: (N, C1, H, W) NCHW; returns (N, C2, H, W) NCHW."""
    x = jnp.transpose(x_nchw, (0, 2, 3, 1))  # -> NHWC for the kernels
    y = _conv_bn_silu(x, params["w1"], params["g1"], params["b1"],
                      params["m1"], params["v1"], k=k, s=s, eps=eps)
    z = _conv_bn_silu(y, params["w2"], params["g2"], params["b2"],
                      params["m2"], params["v2"], k=5, s=1, eps=eps)
    out = jnp.concatenate([y, z], axis=-1)    # torch.cat([y, cv2(y)], dim=1)
    return jnp.transpose(out, (0, 3, 1, 2))   # back to NCHW


# ----------------------------- pure-JAX reference -----------------------------

def _ref_conv_bn_silu(x, w, gamma, beta, mean, var, *, k, eps=1e-5):
    p = k // 2
    y = jax.lax.conv_general_dilated(
        x, w, window_strides=(1, 1), padding=[(p, p), (p, p)],
        dimension_numbers=("NCHW", "OIHW", "NCHW"))
    scale = gamma / jnp.sqrt(var + eps)
    bias = beta - mean * scale
    y = y * scale[None, :, None, None] + bias[None, :, None, None]
    return y * jax.nn.sigmoid(y)


def ghostconv_ref(x, params, *, k=1, eps=1e-5):
    y = _ref_conv_bn_silu(x, params["w1"], params["g1"], params["b1"],
                          params["m1"], params["v1"], k=k, eps=eps)
    z = _ref_conv_bn_silu(y, params["w2"], params["g2"], params["b2"],
                          params["m2"], params["v2"], k=5, eps=eps)
    return jnp.concatenate([y, z], axis=1)


if __name__ == "__main__":
    N, C1, C2, H, W = 2, 4, 8, 16, 16
    k, s = 1, 1
    c_ = C2 // 2

    key = jax.random.PRNGKey(0)
    kx, kw1, kw2 = jax.random.split(key, 3)
    x = jax.random.normal(kx, (N, C1, H, W), dtype=jnp.float32)
    w1 = 0.1 * jax.random.normal(kw1, (c_, C1, k, k), dtype=jnp.float32)
    w2 = 0.1 * jax.random.normal(kw2, (c_, c_, 5, 5), dtype=jnp.float32)

    def bn_params(c, off):
        g = 1.0 + 0.1 * jnp.arange(c, dtype=jnp.float32) + off
        b = 0.05 * jnp.arange(c, dtype=jnp.float32) - off
        m = 0.01 * jnp.arange(c, dtype=jnp.float32)
        v = 1.0 + 0.02 * jnp.arange(c, dtype=jnp.float32)
        return g, b, m, v

    g1, b1, m1, v1 = bn_params(c_, 0.0)
    g2, b2, m2, v2 = bn_params(c_, 0.1)
    params = dict(w1=w1, g1=g1, b1=b1, m1=m1, v1=v1,
                  w2=w2, g2=g2, b2=b2, m2=m2, v2=v2)

    out = ghostconv_forward(x, params, k=k, s=s)
    out = jax.block_until_ready(out)

    ref = ghostconv_ref(x, params, k=k)
    assert out.shape == (N, C2, H, W), out.shape
    # Tolerance covers the EUP approximate reciprocal in SiLU and default-precision
    # MXU accumulation differences vs the XLA convolution reference; structural bugs
    # (misaligned taps / channel mixups) produce O(0.1+) errors and would still trip.
    max_err = float(jnp.max(jnp.abs(out - ref)))
    assert jnp.allclose(out, ref, atol=3e-2, rtol=3e-2), max_err

    print("KERNEL_OK")
</pallas_src>

<mosaic_0001>
module attributes {stable_mosaic.version = 11 : i64} {
  func.func @_conv_bn_silu_kernel(%arg0: i32, %arg1: i32, %arg2: memref<1x16x16x4xf32, #tpu.memory_space<vmem>>, %arg3: memref<1x4x4xf32, #tpu.memory_space<vmem>>, %arg4: memref<1x4xf32, #tpu.memory_space<vmem>>, %arg5: memref<1x4xf32, #tpu.memory_space<vmem>>, %arg6: memref<1x16x16x4xf32, #tpu.memory_space<vmem>>) attributes {dimension_semantics = [#tpu.dimension_semantics<parallel>, #tpu.dimension_semantics<parallel>], iteration_bounds = array<i64: 2, 1>, scalar_prefetch = 0 : i64, scratch_operands = 0 : i64, tpu.core_type = #tpu.core_type<tc>, window_params = [{transform_indices = @transform_0, window_bounds = array<i64: 1, 16, 16, 4>}, {transform_indices = @transform_1, window_bounds = array<i64: 1, 4, 4>}, {transform_indices = @transform_2, window_bounds = array<i64: 1, 4>}, {transform_indices = @transform_3, window_bounds = array<i64: 1, 4>}, {transform_indices = @transform_4, window_bounds = array<i64: 1, 16, 16, 4>}]} {
    %cst = arith.constant 0.000000e+00 : f32
    %0 = vector.broadcast %cst : f32 to vector<256x4xf32>
    %c0 = arith.constant 0 : index
    %c0_0 = arith.constant 0 : index
    %c0_1 = arith.constant 0 : index
    %c0_2 = arith.constant 0 : index
    %1 = vector.load %arg2[%c0, %c0_0, %c0_1, %c0_2] : memref<1x16x16x4xf32, #tpu.memory_space<vmem>>, vector<1x16x16x4xf32>
    %2 = vector.shape_cast %1 : vector<1x16x16x4xf32> to vector<16x16x4xf32>
    %3 = vector.shape_cast %2 : vector<16x16x4xf32> to vector<256x4xf32>
    %c0_3 = arith.constant 0 : index
    %c0_4 = arith.constant 0 : index
    %c0_5 = arith.constant 0 : index
    %4 = vector.load %arg3[%c0_3, %c0_4, %c0_5] : memref<1x4x4xf32, #tpu.memory_space<vmem>>, vector<1x4x4xf32>
    %5 = vector.shape_cast %4 : vector<1x4x4xf32> to vector<4x4xf32>
    %cst_6 = arith.constant dense<0.000000e+00> : vector<256x4xf32>
    %6 = tpu.matmul %3, %5, %cst_6 {dimension_numbers = #tpu.dot_dimension_numbers<[1], [0], [0], [1], [0, 0, 1, 1], [], []>} : vector<256x4xf32>, vector<4x4xf32>, vector<256x4xf32> -> vector<256x4xf32>
    %7 = arith.addf %0, %6 : vector<256x4xf32>
    %c0_7 = arith.constant 0 : index
    %c0_8 = arith.constant 0 : index
    %8 = vector.load %arg4[%c0_7, %c0_8] : memref<1x4xf32, #tpu.memory_space<vmem>>, vector<1x4xf32>
    %9 = vector.broadcast %8 : vector<1x4xf32> to vector<256x4xf32>
    %10 = arith.mulf %7, %9 : vector<256x4xf32>
    %c0_9 = arith.constant 0 : index
    %c0_10 = arith.constant 0 : index
    %11 = vector.load %arg5[%c0_9, %c0_10] : memref<1x4xf32, #tpu.memory_space<vmem>>, vector<1x4xf32>
    %12 = vector.broadcast %11 : vector<1x4xf32> to vector<256x4xf32>
    %13 = arith.addf %10, %12 : vector<256x4xf32>
    %cst_11 = arith.constant 0.000000e+00 : f32
    %14 = vector.broadcast %cst_11 : f32 to vector<256x4xf32>
    %15 = arith.subf %14, %13 : vector<256x4xf32>
    %16 = math.exp %15 : vector<256x4xf32>
    %cst_12 = arith.constant 1.000000e+00 : f32
    %17 = vector.broadcast %cst_12 : f32 to vector<256x4xf32>
    %18 = arith.addf %17, %16 : vector<256x4xf32>
    %19 = tpu.reciprocal %18 {approx = true} : vector<256x4xf32> -> vector<256x4xf32>
    %20 = arith.mulf %13, %19 : vector<256x4xf32>
    %21 = vector.shape_cast %20 : vector<256x4xf32> to vector<16x16x4xf32>
    %c0_13 = arith.constant 0 : index
    %c0_14 = arith.constant 0 : index
    %c0_15 = arith.constant 0 : index
    %c0_16 = arith.constant 0 : index
    %22 = vector.load %arg6[%c0_13, %c0_14, %c0_15, %c0_16] : memref<1x16x16x4xf32, #tpu.memory_space<vmem>>, vector<1x16x16x4xf32>
    %23 = vector.shape_cast %22 : vector<1x16x16x4xf32> to vector<16x16x4xf32>
    %24 = vector.shape_cast %21 : vector<16x16x4xf32> to vector<1x16x16x4xf32>
    tpu.vector_store %arg6[%c0_13, %c0_14, %c0_15, %c0_16], %24 {strides = array<i32>} : memref<1x16x16x4xf32, #tpu.memory_space<vmem>>, vector<1x16x16x4xf32>,
    return
  }
  func.func @transform_0(%arg0: i32, %arg1: i32) -> (i32, i32, i32, i32) {
    %c0_i32 = arith.constant 0 : i32
    %c0_i32_0 = arith.constant 0 : i32
    %c0_i32_1 = arith.constant 0 : i32
    %c0_i32_2 = arith.constant 0 : i32
    return %arg0, %c0_i32, %c0_i32_0, %c0_i32_1 : i32, i32, i32, i32
  }
  func.func @transform_1(%arg0: i32, %arg1: i32) -> (i32, i32, i32) {
    %c0_i32 = arith.constant 0 : i32
    %c0_i32_0 = arith.constant 0 : i32
    %c0_i32_1 = arith.constant 0 : i32
    return %c0_i32, %c0_i32_0, %arg1 : i32, i32, i32
  }
  func.func @transform_2(%arg0: i32, %arg1: i32) -> (i32, i32) {
    %c0_i32 = arith.constant 0 : i32
    %c0_i32_0 = arith.constant 0 : i32
    return %c0_i32, %arg1 : i32, i32
  }
  func.func @transform_3(%arg0: i32, %arg1: i32) -> (i32, i32) {
    %c0_i32 = arith.constant 0 : i32
    %c0_i32_0 = arith.constant 0 : i32
    return %c0_i32, %arg1 : i32, i32
  }
  func.func @transform_4(%arg0: i32, %arg1: i32) -> (i32, i32, i32, i32) {
    %c0_i32 = arith.constant 0 : i32
    %c0_i32_0 = arith.constant 0 : i32
    %c0_i32_1 = arith.constant 0 : i32
    return %arg0, %c0_i32, %c0_i32_0, %arg1 : i32, i32, i32, i32
  }
}

</mosaic_0001>

<llo_original>
// kernel: tpu_custom_call.1
$region0: #{tpu_custom_call.1}
  #allocation0 [shape = 'u32[]', space=smem, size = 0x4, offset = 0x4, fixed_abs, tag = 'smem constant byte address 0x4 - core index']
  #allocation1 [shape = 'u32[144,128]{1,0:T(1,128)}', space=vmem, size = 0x12000, scoped, tag = 'internal scratch']
  %s0 = inlined_call_operand.vmem [shape: f32[2,16,16,4], index: 0, kind: input, shape index: {}]
  %s1 = inlined_call_operand.vmem [shape: f32[1,4,4], index: 1, kind: input, shape index: {}]
  %s2 = inlined_call_operand.vmem [shape: f32[1,4], index: 2, kind: input, shape index: {}]
  %s3 = inlined_call_operand.vmem [shape: f32[1,4], index: 3, kind: input, shape index: {}]
  %s4 = inlined_call_operand.vmem [shape: f32[2,16,16,4], index: 4, kind: output, shape index: {}]
  %s5 = sld [smem:[#allocation0]]
  $region49: #{tpu_custom_call.1} parent=0
    _
  %s7 = ssub.s32 1, %s5
  %s8 = scalar_select 0, %s7, %s5
  loop: start=0, step=1, limit=4
  $region2: #{tpu_custom_call.1} parent=0 // loop_pre_header
    _
  $region3: #{tpu_custom_call.1} parent=0 // loop_header
    %s10 = sphi 0, %s14
    %p11 = scmp.ge.s32.totalorder %s10, 4
    %s17 = sphi 0, %s29
    %s18 = sphi 0, %s25
    %s19 = sphi 0, %s17
    %s20 = sphi 0, %s18
    %s21 = sphi 0, %s19
    %s22 = sphi 0, %s20
    %s32 = sphi 0, %s34
    %s35 = sphi 0, %s32
    %s36 = sphi 0, %s35
    %s52 = sphi 0, %s36
    %s58 = sphi 0, %s60
    %s61 = sphi 0, %s58
    %s62 = sphi 0, %s61
    %s78 = sphi 0, %s62
    %s84 = sphi 0, %s86
    %s87 = sphi 0, %s84
    %s88 = sphi 0, %s87
    %s104 = sphi 0, %s88
    %s110 = sphi 0, %s112
    %s113 = sphi 0, %s110
    %s114 = sphi 0, %s113
    %s130 = sphi 0, %s114
    %s138 = sphi 0, %s140
    %s141 = sphi 0, %s138
    %s142 = sphi 0, %s141
    %s158 = sphi 0, %s142
  $region4: #{tpu_custom_call.1} parent=0 // loop_header_branch
    %13 = sbr.rel (%p11) target = $region8
  $region5: #{tpu_custom_call.1} parent=0 // loop_body
    %s15 = ssub.s32 %s10, 1
    %s16 = ssub.s32 %s10, 2
    %s23 = sadd.s32 1, %s18
    %p24 = scmp.ge.s32.totalorder %s23, 1
    %s25 = scalar_select %p24, 0, %s23
    %s26 = sadd.s32 1, %s17
    %s27 = scalar_select %p24, %s26, %s17
    %p28 = scmp.ge.s32.totalorder %s27, 2
    %s29 = scalar_select %p28, 0, %s27
    %s30 = ssub.s32 %s17, %s29
    %p31 = scmp.eq.s32.totalorder %s30, 0
    %s33 = sadd.s32 %s32, 1
    %s34 = scalar_select %p31, %s32, %s33
    %p37 = pneg %p31
    %p38 = scmp.eq.s32.totalorder %s10, 1
    %p39 = por %p37, %p38
    %p40 = scmp.ne.s32.totalorder %s32, %s35
    %p41 = scmp.eq.s32.totalorder %s10, 0
    %p42 = por %p40, %p41
    %p43 = scmp.ne.s32.totalorder %s32, %s35
    %p44 = scmp.eq.s32.totalorder %s15, 1
    %p45 = por %p43, %p44
    %p46 = scmp.ne.s32.totalorder %s35, %s36
    %p47 = scmp.eq.s32.totalorder %s15, 0
    %p48 = por %p46, %p47
    %p49 = scmp.ne.s32.totalorder %s35, %s36
    %p50 = scmp.eq.s32.totalorder %s16, 1
    %p51 = por %p49, %p50
    %p53 = scmp.ne.s32.totalorder %s36, %s52
    %p54 = scmp.eq.s32.totalorder %s16, 0
    %p55 = por %p53, %p54
    %s56 = ssub.s32 %s18, %s25
    %p57 = scmp.eq.s32.totalorder %s56, 0
    %s59 = sadd.s32 %s58, 1
    %s60 = scalar_select %p57, %s58, %s59
    %p63 = pneg %p57
    %p64 = scmp.eq.s32.totalorder %s10, 1
    %p65 = por %p63, %p64
    %p66 = scmp.ne.s32.totalorder %s58, %s61
    %p67 = scmp.eq.s32.totalorder %s10, 0
    %p68 = por %p66, %p67
    %p69 = scmp.ne.s32.totalorder %s58, %s61
    %p70 = scmp.eq.s32.totalorder %s15, 1
    %p71 = por %p69, %p70
    %p72 = scmp.ne.s32.totalorder %s61, %s62
    %p73 = scmp.eq.s32.totalorder %s15, 0
    %p74 = por %p72, %p73
    %p75 = scmp.ne.s32.totalorder %s61, %s62
    %p76 = scmp.eq.s32.totalorder %s16, 1
    %p77 = por %p75, %p76
    %p79 = scmp.ne.s32.totalorder %s62, %s78
    %p80 = scmp.eq.s32.totalorder %s16, 0
    %p81 = por %p79, %p80
    %s82 = ssub.s32 %s18, %s25
    %p83 = scmp.eq.s32.totalorder %s82, 0
    %s85 = sadd.s32 %s84, 1
    %s86 = scalar_select %p83, %s84, %s85
    %p89 = pneg %p83
    %p90 = scmp.eq.s32.totalorder %s10, 1
    %p91 = por %p89, %p90
    %p92 = scmp.ne.s32.totalorder %s84, %s87
    %p93 = scmp.eq.s32.totalorder %s10, 0
    %p94 = por %p92, %p93
    %p95 = scmp.ne.s32.totalorder %s84, %s87
    %p96 = scmp.eq.s32.totalorder %s15, 1
    %p97 = por %p95, %p96
    %p98 = scmp.ne.s32.totalorder %s87, %s88
    %p99 = scmp.eq.s32.totalorder %s15, 0
    %p100 = por %p98, %p99
    %p101 = scmp.ne.s32.totalorder %s87, %s88
    %p102 = scmp.eq.s32.totalorder %s16, 1
    %p103 = por %p101, %p102
    %p105 = scmp.ne.s32.totalorder %s88, %s104
    %p106 = scmp.eq.s32.totalorder %s16, 0
    %p107 = por %p105, %p106
    %s108 = ssub.s32 %s18, %s25
    %p109 = scmp.eq.s32.totalorder %s108, 0
    %s111 = sadd.s32 %s110, 1
    %s112 = scalar_select %p109, %s110, %s111
    %p115 = pneg %p109
    %p116 = scmp.eq.s32.totalorder %s10, 1
    %p117 = por %p115, %p116
    %p118 = scmp.ne.s32.totalorder %s110, %s113
    %p119 = scmp.eq.s32.totalorder %s10, 0
    %p120 = por %p118, %p119
    %p121 = scmp.ne.s32.totalorder %s110, %s113
    %p122 = scmp.eq.s32.totalorder %s15, 1
    %p123 = por %p121, %p122
    %p124 = scmp.ne.s32.totalorder %s113, %s114
    %p125 = scmp.eq.s32.totalorder %s15, 0
    %p126 = por %p124, %p125
    %p127 = scmp.ne.s32.totalorder %s113, %s114
    %p128 = scmp.eq.s32.totalorder %s16, 1
    %p129 = por %p127, %p128
    %p131 = scmp.ne.s32.totalorder %s114, %s130
    %p132 = scmp.eq.s32.totalorder %s16, 0
    %p133 = por %p131, %p132
    %s134 = ssub.s32 %s17, %s29
    %s135 = ssub.s32 %s18, %s25
    %s136 = sor.u32 %s134, %s135
    %p137 = scmp.eq.s32.totalorder %s136, 0
    %s139 = sadd.s32 %s138, 1
    %s140 = scalar_select %p137, %s138, %s139
    %p143 = pneg %p137
    %p144 = scmp.eq.s32.totalorder %s10, 1
    %p145 = por %p143, %p144
    %p146 = scmp.ne.s32.totalorder %s138, %s141
    %p147 = scmp.eq.s32.totalorder %s10, 0
    %p148 = por %p146, %p147
    %p149 = scmp.ne.s32.totalorder %s138, %s141
    %p150 = scmp.eq.s32.totalorder %s15, 1
    %p151 = por %p149, %p150
    %p152 = scmp.ne.s32.totalorder %s141, %s142
    %p153 = scmp.eq.s32.totalorder %s15, 0
    %p154 = por %p152, %p153
    %p155 = scmp.ne.s32.totalorder %s141, %s142
    %p156 = scmp.eq.s32.totalorder %s16, 1
    %p157 = por %p155, %p156
    %p159 = scmp.ne.s32.totalorder %s142, %s158
    %p160 = scmp.eq.s32.totalorder %s16, 0
    %p161 = por %p159, %p160
    %p162 = scmp.le.s32.totalorder 1, %s10
    %p163 = scmp.lt.s32.totalorder %s10, 3
    %p164 = pnand %p162, %p163
    %p165 = pneg %p164
    // Predicated region
    $region9: #{tpu_custom_call.1} parent=5 // pred_check
      _
    $region10: #{tpu_custom_call.1} parent=5 // pred_check_branch
      %167 = sbr.rel (%p164) target = $region12
    $region11: #{tpu_custom_call.1} parent=5 // pred_region
      %s168 = ssub.s32 %s10, 1
      // Predicated region
      $region13: #{tpu_custom_call.1} parent=11 // pred_check
        %p169 = pneg %p74
      $region14: #{tpu_custom_call.1} parent=11 // pred_check_branch
        %171 = sbr.rel (%p169) target = $region16
      $region15: #{tpu_custom_call.1} parent=11 // pred_region
        %p172 = scmp.lt.s32.totalorder %s20, 0
        %s173 = scalar_select %p172, %s20, 0
        %s174 = smul.addr %s173, 4
        %s175 = scalar_lea.vmem %s1, %s174
      $region16: #{tpu_custom_call.1} parent=11 // pred_fallthru
        _
      // Predicated region
      $region17: #{tpu_custom_call.1} parent=11 // pred_check
        %p176 = pneg %p100
      $region18: #{tpu_custom_call.1} parent=11 // pred_check_branch
        %178 = sbr.rel (%p176) target = $region20
      $region19: #{tpu_custom_call.1} parent=11 // pred_region
        %p179 = scmp.lt.s32.totalorder %s20, 0
        %s180 = scalar_select %p179, %s20, 0
        %s181 = scalar_lea.vmem %s2, %s180
      $region20: #{tpu_custom_call.1} parent=11 // pred_fallthru
        _
      // Predicated region
      $region21: #{tpu_custom_call.1} parent=11 // pred_check
        %p182 = pneg %p126
      $region22: #{tpu_custom_call.1} parent=11 // pred_check_branch
        %184 = sbr.rel (%p182) target = $region24
      $region23: #{tpu_custom_call.1} parent=11 // pred_region
        %p185 = scmp.lt.s32.totalorder %s20, 0
        %s186 = scalar_select %p185, %s20, 0
        %s187 = scalar_lea.vmem %s3, %s186
      $region24: #{tpu_custom_call.1} parent=11 // pred_fallthru
        _
    $region12: #{tpu_custom_call.1} parent=5 // pred_fallthru
      _
    %p188 = scmp.lt.s32.totalorder %s10, 2
    // Predicated region
    $region25: #{tpu_custom_call.1} parent=5 // pred_check
      %p189 = pneg %p188
    $region26: #{tpu_custom_call.1} parent=5 // pred_check_branch
      %191 = sbr.rel (%p189) target = $region28
    $region27: #{tpu_custom_call.1} parent=5 // pred_region
      // Predicated region
      $region29: #{tpu_custom_call.1} parent=27 // pred_check
        %p192 = pneg %p42
      $region30: #{tpu_custom_call.1} parent=27 // pred_check_branch
        %194 = sbr.rel (%p192) target = $region32
      $region31: #{tpu_custom_call.1} parent=27 // pred_region
        %p195 = scmp.lt.s32.totalorder %s17, 1
        %s196 = scalar_select %p195, %s17, 1
        %s197 = smul.addr %s196, 32
        %s198 = smul.addr %s197, 8
        %s199 = scalar_lea.vmem %s0, %s198
      $region32: #{tpu_custom_call.1} parent=27 // pred_fallthru
        _
    $region28: #{tpu_custom_call.1} parent=5 // pred_fallthru
      _
    %p200 = scmp.le.s32.totalorder 1, %s10
    %p201 = scmp.lt.s32.totalorder %s10, 3
    %p202 = pnand %p200, %p201
    %p203 = pneg %p202
    // Predicated region
    $region33: #{tpu_custom_call.1} parent=5 // pred_check
      _
    $region34: #{tpu_custom_call.1} parent=5 // pred_check_branch
      %205 = sbr.rel (%p202) target = $region36
    $region35: #{tpu_custom_call.1} parent=5 // pred_region
      %s206 = ssub.s32 %s10, 1
      %p207 = scmp.lt.s32.totalorder %s19, 1
      %s208 = scalar_select %p207, %s19, 1
      %s209 = smul.addr %s208, 32
      %s210 = smul.addr %s209, 8
      %s211 = scalar_lea.vmem %s0, %s210
      %p212 = pneg %p48
      %p213 = pneg %p45
      %p214 = scmp.lt.s32.totalorder %s20, 0
      %s215 = scalar_select %p214, %s20, 0
      %s216 = smul.addr %s215, 4
      %s217 = scalar_lea.vmem %s1, %s216
      %p218 = pneg %p74
      %p219 = pneg %p71
      %p220 = scmp.lt.s32.totalorder %s20, 0
      %s221 = scalar_select %p220, %s20, 0
      %s222 = scalar_lea.vmem %s2, %s221
      %p223 = pneg %p100
      %p224 = pneg %p97
      %p225 = scmp.lt.s32.totalorder %s20, 0
      %s226 = scalar_select %p225, %s20, 0
      %s227 = scalar_lea.vmem %s3, %s226
      %p228 = pneg %p126
      %p229 = pneg %p123
      %p230 = pneg %p154
      %p231 = pneg %p151
      %p232 = scmp.lt.s32.totalorder %s19, 1
      %s233 = scalar_select %p232, %s19, 1
      %p234 = scmp.lt.s32.totalorder %s20, 0
      %s235 = scalar_select %p234, %s20, 0
      %s236 = smul.addr %s233, 32
      %s237 = sadd.s32 %s235, %s236
      %s238 = smul.addr %s237, 8
      %s239 = scalar_lea.vmem %s4, %s238
      %p240 = scmp.lt.s32.totalorder %s19, 1
      %s241 = scalar_select %p240, %s19, 1
      %s242 = smul.addr %s241, 32
      %s243 = smul.addr %s242, 8
      %s244 = scalar_lea.vmem %s0, %s243
      %p245 = scmp.lt.s32.totalorder %s20, 0
      %s246 = scalar_select %p245, %s20, 0
      %s247 = smul.addr %s246, 4
      %s248 = scalar_lea.vmem %s1, %s247
      %p249 = scmp.lt.s32.totalorder %s20, 0
      %s250 = scalar_select %p249, %s20, 0
      %s251 = scalar_lea.vmem %s2, %s250
      %p252 = scmp.lt.s32.totalorder %s20, 0
      %s253 = scalar_select %p252, %s20, 0
      %s254 = scalar_lea.vmem %s3, %s253
      %p255 = scmp.lt.s32.totalorder %s19, 1
      %s256 = scalar_select %p255, %s19, 1
      %p257 = scmp.lt.s32.totalorder %s20, 0
      %s258 = scalar_select %p257, %s20, 0
      %s259 = smul.addr %s256, 32
      %s260 = sadd.s32 %s258, %s259
      %s261 = smul.addr %s260, 8
      %s262 = scalar_lea.vmem %s4, %s261
      %v263 = vld [vmem:[%s244] sm:$0xff]
      %v264 = vld [vmem:[%s244 + $0x8] sm:$0xff]
      %v265 = vld [vmem:[%s244 + $0x10] sm:$0xff]
      %v266 = vld [vmem:[%s244 + $0x18] sm:$0xff]
      %v267 = vld [vmem:[%s244 + $0x20] sm:$0xff]
      %v268 = vld [vmem:[%s244 + $0x28] sm:$0xff]
      %v269 = vld [vmem:[%s244 + $0x30] sm:$0xff]
      %v270 = vld [vmem:[%s244 + $0x38] sm:$0xff]
      %v271 = vld [vmem:[%s244 + $0x40] sm:$0xff]
      %v272 = vld [vmem:[%s244 + $0x48] sm:$0xff]
      %v273 = vld [vmem:[%s244 + $0x50] sm:$0xff]
      %v274 = vld [vmem:[%s244 + $0x58] sm:$0xff]
      %v275 = vld [vmem:[%s244 + $0x60] sm:$0xff]
      %v276 = vld [vmem:[%s244 + $0x68] sm:$0xff]
      %v277 = vld [vmem:[%s244 + $0x70] sm:$0xff]
      %v278 = vld [vmem:[%s244 + $0x78] sm:$0xff]
      %v279 = vld [vmem:[%s244 + $0x80] sm:$0xff]
      %v280 = vld [vmem:[%s244 + $0x88] sm:$0xff]
      %v281 = vld [vmem:[%s244 + $0x90] sm:$0xff]
      %v282 = vld [vmem:[%s244 + $0x98] sm:$0xff]
      %v283 = vld [vmem:[%s244 + $0xa0] sm:$0xff]
      %v284 = vld [vmem:[%s244 + $0xa8] sm:$0xff]
      %v285 = vld [vmem:[%s244 + $0xb0] sm:$0xff]
      %v286 = vld [vmem:[%s244 + $0xb8] sm:$0xff]
      %v287 = vld [vmem:[%s244 + $0xc0] sm:$0xff]
      %v288 = vld [vmem:[%s244 + $0xc8] sm:$0xff]
      %v289 = vld [vmem:[%s244 + $0xd0] sm:$0xff]
      %v290 = vld [vmem:[%s244 + $0xd8] sm:$0xff]
      %v291 = vld [vmem:[%s244 + $0xe0] sm:$0xff]
      %v292 = vld [vmem:[%s244 + $0xe8] sm:$0xff]
      %v293 = vld [vmem:[%s244 + $0xf0] sm:$0xff]
      %v294 = vld [vmem:[%s244 + $0xf8] sm:$0xff]
      %v295 = vld [vmem:[%s248] sm:$0xf]
      %vm296 = vcmask 31744
      %v298 = vsel %vm296, %v263, 0
      %v301 = vsel %vm296, %v264, 0
      %v304 = vsel %vm296, %v265, 0
      %v307 = vsel %vm296, %v266, 0
      %v310 = vsel %vm296, %v267, 0
      %v313 = vsel %vm296, %v268, 0
      %v316 = vsel %vm296, %v269, 0
      %v319 = vsel %vm296, %v270, 0
      %v322 = vsel %vm296, %v271, 0
      %v325 = vsel %vm296, %v272, 0
      %v328 = vsel %vm296, %v273, 0
      %v331 = vsel %vm296, %v274, 0
      %v334 = vsel %vm296, %v275, 0
      %v337 = vsel %vm296, %v276, 0
      %v340 = vsel %vm296, %v277, 0
      %v343 = vsel %vm296, %v278, 0
      %v346 = vsel %vm296, %v279, 0
      %v349 = vsel %vm296, %v280, 0
      %v352 = vsel %vm296, %v281, 0
      %v355 = vsel %vm296, %v282, 0
      %v358 = vsel %vm296, %v283, 0
      %v361 = vsel %vm296, %v284, 0
      %v364 = vsel %vm296, %v285, 0
      %v367 = vsel %vm296, %v286, 0
      %v370 = vsel %vm296, %v287, 0
      %v373 = vsel %vm296, %v288, 0
      %v376 = vsel %vm296, %v289, 0
      %v379 = vsel %vm296, %v290, 0
      %v382 = vsel %vm296, %v291, 0
      %v385 = vsel %vm296, %v292, 0
      %v388 = vsel %vm296, %v293, 0
      %v391 = vsel %vm296, %v294, 0
      %vm393 = vcmask 1043456
      %v395 = vsel %vm393, %v295, 0
      %397 = vmatprep.subr.mxu0 0.0
      %398 = vmatpush1.msra.mxu0 %v395
      %399 = vmatprep.subr.mxu0 0.0
      %400 = vmatpush1.msra.mxu0 0.0
      %401 = vmatprep.subr.mxu0 0.0
      %402 = vmatpush1.msra.mxu0 0.0
      %403 = vmatprep.subr.mxu0 0.0
      %404 = vmatpush1.msra.mxu0 0.0
      %405 = vmatprep.subr.mxu0 0.0
      %406 = vmatpush1.msra.mxu0 0.0
      %407 = vmatprep.subr.mxu0 0.0
      %408 = vmatpush1.msra.mxu0 0.0
      %409 = vmatprep.subr.mxu0 0.0
      %410 = vmatpush1.msra.mxu0 0.0
      %411 = vmatprep.subr.mxu0 0.0
      %412 = vmatpush1.msra.mxu0 0.0
      %413 = vmatprep.subr.mxu0 0.0
      %414 = vmatpush1.msra.mxu0 0.0
      %415 = vmatprep.subr.mxu0 0.0
      %416 = vmatpush1.msra.mxu0 0.0
      %417 = vmatprep.subr.mxu0 0.0
      %418 = vmatpush1.msra.mxu0 0.0
      %419 = vmatprep.subr.mxu0 0.0
      %420 = vmatpush1.msra.mxu0 0.0
      %421 = vmatprep.subr.mxu0 0.0
      %422 = vmatpush1.msra.mxu0 0.0
      %423 = vmatprep.subr.mxu0 0.0
      %424 = vmatpush1.msra.mxu0 0.0
      %425 = vmatprep.subr.mxu0 0.0
      %426 = vmatpush1.msra.mxu0 0.0
      %427 = vmatprep.subr.mxu0 0.0
      %428 = vmatpush1.msra.mxu0 0.0
      %429 = vmatprep.subr.mxu0 0.0
      %430 = vmatpush1.msra.mxu0 0.0
      %431 = vmatprep.subr.mxu0 0.0
      %432 = vmatpush1.msra.mxu0 0.0
      %433 = vmatprep.subr.mxu0 0.0
      %434 = vmatpush1.msra.mxu0 0.0
      %435 = vmatprep.subr.mxu0 0.0
      %436 = vmatpush1.msra.mxu0 0.0
      %437 = vmatprep.subr.mxu0 0.0
      %438 = vmatpush1.msra.mxu0 0.0
      %439 = vmatprep.subr.mxu0 0.0
      %440 = vmatpush1.msra.mxu0 0.0
      %441 = vmatprep.subr.mxu0 0.0
      %442 = vmatpush1.msra.mxu0 0.0
      %443 = vmatprep.subr.mxu0 0.0
      %444 = vmatpush1.msra.mxu0 0.0
      %445 = vmatprep.subr.mxu0 0.0
      %446 = vmatpush1.msra.mxu0 0.0
      %447 = vmatprep.subr.mxu0 0.0
      %448 = vmatpush1.msra.mxu0 0.0
      %449 = vmatprep.subr.mxu0 0.0
      %450 = vmatpush1.msra.mxu0 0.0
      %451 = vmatprep.subr.mxu0 0.0
      %452 = vmatpush1.msra.mxu0 0.0
      %453 = vmatprep.subr.mxu0 0.0
      %454 = vmatpush1.msra.mxu0 0.0
      %455 = vmatprep.subr.mxu0 0.0
      %456 = vmatpush1.msra.mxu0 0.0
      %457 = vmatprep.subr.mxu0 0.0
      %458 = vmatpush1.msra.mxu0 0.0
      %459 = vmatprep.subr.mxu0 0.0
      %460 = vmatpush1.msra.mxu0 0.0
      %461 = vmatprep.mubr.f32.mxu0 0.0
      %462 = vmatmul.mubr.f32.gmra.mrb[0].mxu0 %v298
      %v463 = vpop.f32.mrb[0].mxu0
      %v464 = vadd.f32 0.0, %v463
      %v465 = vpop.f32.mrb[0].mxu0
      %466 = vmatprep.mubr.f32.mxu0 0.0
      %467 = vmatmul.mubr.f32.gmra.mrb[0].mxu0 %v301
      %v468 = vpop.f32.mrb[0].mxu0
      %v469 = vadd.f32 0.0, %v468
      %v470 = vpop.f32.mrb[0].mxu0
      %471 = vmatprep.mubr.f32.mxu0 0.0
      %472 = vmatmul.mubr.f32.gmra.mrb[0].mxu0 %v304
      %v473 = vpop.f32.mrb[0].mxu0
      %v474 = vadd.f32 0.0, %v473
      %v475 = vpop.f32.mrb[0].mxu0
      %476 = vmatprep.mubr.f32.mxu0 0.0
      %477 = vmatmul.mubr.f32.gmra.mrb[0].mxu0 %v307
      %v478 = vpop.f32.mrb[0].mxu0
      %v479 = vadd.f32 0.0, %v478
      %v480 = vpop.f32.mrb[0].mxu0
      %481 = vmatprep.mubr.f32.mxu0 0.0
      %482 = vmatmul.mubr.f32.gmra.mrb[0].mxu0 %v310
      %v483 = vpop.f32.mrb[0].mxu0
      %v484 = vadd.f32 0.0, %v483
      %v485 = vpop.f32.mrb[0].mxu0
      %486 = vmatprep.mubr.f32.mxu0 0.0
      %487 = vmatmul.mubr.f32.gmra.mrb[0].mxu0 %v313
      %v488 = vpop.f32.mrb[0].mxu0
      %v489 = vadd.f32 0.0, %v488
      %v490 = vpop.f32.mrb[0].mxu0
      %491 = vmatprep.mubr.f32.mxu0 0.0
      %492 = vmatmul.mubr.f32.gmra.mrb[0].mxu0 %v316
      %v493 = vpop.f32.mrb[0].mxu0
      %v494 = vadd.f32 0.0, %v493
      %v495 = vpop.f32.mrb[0].mxu0
      %496 = vmatprep.mubr.f32.mxu0 0.0
      %497 = vmatmul.mubr.f32.gmra.mrb[0].mxu0 %v319
      %v498 = vpop.f32.mrb[0].mxu0
      %v499 = vadd.f32 0.0, %v498
      %v500 = vpop.f32.mrb[0].mxu0
      %501 = vmatprep.mubr.f32.mxu0 0.0
      %502 = vmatmul.mubr.f32.gmra.mrb[0].mxu0 %v322
      %v503 = vpop.f32.mrb[0].mxu0
      %v504 = vadd.f32 0.0, %v503
      %v505 = vpop.f32.mrb[0].mxu0
      %506 = vmatprep.mubr.f32.mxu0 0.0
      %507 = vmatmul.mubr.f32.gmra.mrb[0].mxu0 %v325
      %v508 = vpop.f32.mrb[0].mxu0
      %v509 = vadd.f32 0.0, %v508
      %v510 = vpop.f32.mrb[0].mxu0
      %511 = vmatprep.mubr.f32.mxu0 0.0
      %512 = vmatmul.mubr.f32.gmra.mrb[0].mxu0 %v328
      %v513 = vpop.f32.mrb[0].mxu0
      %v514 = vadd.f32 0.0, %v513
      %v515 = vpop.f32.mrb[0].mxu0
      %516 = vmatprep.mubr.f32.mxu0 0.0
      %517 = vmatmul.mubr.f32.gmra.mrb[0].mxu0 %v331
      %v518 = vpop.f32.mrb[0].mxu0
      %v519 = vadd.f32 0.0, %v518
      %v520 = vpop.f32.mrb[0].mxu0
      %521 = vmatprep.mubr.f32.mxu0 0.0
      %522 = vmatmul.mubr.f32.gmra.mrb[0].mxu0 %v334
      %v523 = vpop.f32.mrb[0].mxu0
      %v524 = vadd.f32 0.0, %v523
      %v525 = vpop.f32.mrb[0].mxu0
      %526 = vmatprep.mubr.f32.mxu0 0.0
      %527 = vmatmul.mubr.f32.gmra.mrb[0].mxu0 %v337
      %v528 = vpop.f32.mrb[0].mxu0
      %v529 = vadd.f32 0.0, %v528
      %v530 = vpop.f32.mrb[0].mxu0
      %531 = vmatprep.mubr.f32.mxu0 0.0
      %532 = vmatmul.mubr.f32.gmra.mrb[0].mxu0 %v340
      %v533 = vpop.f32.mrb[0].mxu0
      %v534 = vadd.f32 0.0, %v533
      %v535 = vpop.f32.mrb[0].mxu0
      %536 = vmatprep.mubr.f32.mxu0 0.0
      %537 = vmatmul.mubr.f32.gmra.mrb[0].mxu0 %v343
      %v538 = vpop.f32.mrb[0].mxu0
      %v539 = vadd.f32 0.0, %v538
      %v540 = vpop.f32.mrb[0].mxu0
      %541 = vmatprep.mubr.f32.mxu0 0.0
      %542 = vmatmul.mubr.f32.gmra.mrb[0].mxu0 %v346
      %v543 = vpop.f32.mrb[0].mxu0
      %v544 = vadd.f32 0.0, %v543
      %v545 = vpop.f32.mrb[0].mxu0
      %546 = vmatprep.mubr.f32.mxu0 0.0
      %547 = vmatmul.mubr.f32.gmra.mrb[0].mxu0 %v349
      %v548 = vpop.f32.mrb[0].mxu0
      %v549 = vadd.f32 0.0, %v548
      %v550 = vpop.f32.mrb[0].mxu0
      %551 = vmatprep.mubr.f32.mxu0 0.0
      %552 = vmatmul.mubr.f32.gmra.mrb[0].mxu0 %v352
      %v553 = vpop.f32.mrb[0].mxu0
      %v554 = vadd.f32 0.0, %v553
      %v555 = vpop.f32.mrb[0].mxu0
      %556 = vmatprep.mubr.f32.mxu0 0.0
      %557 = vmatmul.mubr.f32.gmra.mrb[0].mxu0 %v355
      %v558 = vpop.f32.mrb[0].mxu0
      %v559 = vadd.f32 0.0, %v558
      %v560 = vpop.f32.mrb[0].mxu0
      %561 = vmatprep.mubr.f32.mxu0 0.0
      %562 = vmatmul.mubr.f32.gmra.mrb[0].mxu0 %v358
      %v563 = vpop.f32.mrb[0].mxu0
      %v564 = vadd.f32 0.0, %v563
      %v565 = vpop.f32.mrb[0].mxu0
      %566 = vmatprep.mubr.f32.mxu0 0.0
      %567 = vmatmul.mubr.f32.gmra.mrb[0].mxu0 %v361
      %v568 = vpop.f32.mrb[0].mxu0
      %v569 = vadd.f32 0.0, %v568
      %v570 = vpop.f32.mrb[0].mxu0
      %571 = vmatprep.mubr.f32.mxu0 0.0
      %572 = vmatmul.mubr.f32.gmra.mrb[0].mxu0 %v364
      %v573 = vpop.f32.mrb[0].mxu0
      %v574 = vadd.f32 0.0, %v573
      %v575 = vpop.f32.mrb[0].mxu0
      %576 = vmatprep.mubr.f32.mxu0 0.0
      %577 = vmatmul.mubr.f32.gmra.mrb[0].mxu0 %v367
      %v578 = vpop.f32.mrb[0].mxu0
      %v579 = vadd.f32 0.0, %v578
      %v580 = vpop.f32.mrb[0].mxu0
      %581 = vmatprep.mubr.f32.mxu0 0.0
      %582 = vmatmul.mubr.f32.gmra.mrb[0].mxu0 %v370
      %v583 = vpop.f32.mrb[0].mxu0
      %v584 = vadd.f32 0.0, %v583
      %v585 = vpop.f32.mrb[0].mxu0
      %586 = vmatprep.mubr.f32.mxu0 0.0
      %587 = vmatmul.mubr.f32.gmra.mrb[0].mxu0 %v373
      %v588 = vpop.f32.mrb[0].mxu0
      %v589 = vadd.f32 0.0, %v588
      %v590 = vpop.f32.mrb[0].mxu0
      %591 = vmatprep.mubr.f32.mxu0 0.0
      %592 = vmatmul.mubr.f32.gmra.mrb[0].mxu0 %v376
      %v593 = vpop.f32.mrb[0].mxu0
      %v594 = vadd.f32 0.0, %v593
      %v595 = vpop.f32.mrb[0].mxu0
      %596 = vmatprep.mubr.f32.mxu0 0.0
      %597 = vmatmul.mubr.f32.gmra.mrb[0].mxu0 %v379
      %v598 = vpop.f32.mrb[0].mxu0
      %v599 = vadd.f32 0.0, %v598
      %v600 = vpop.f32.mrb[0].mxu0
      %601 = vmatprep.mubr.f32.mxu0 0.0
      %602 = vmatmul.mubr.f32.gmra.mrb[0].mxu0 %v382
      %v603 = vpop.f32.mrb[0].mxu0
      %v604 = vadd.f32 0.0, %v603
      %v605 = vpop.f32.mrb[0].mxu0
      %606 = vmatprep.mubr.f32.mxu0 0.0
      %607 = vmatmul.mubr.f32.gmra.mrb[0].mxu0 %v385
      %v608 = vpop.f32.mrb[0].mxu0
      %v609 = vadd.f32 0.0, %v608
      %v610 = vpop.f32.mrb[0].mxu0
      %611 = vmatprep.mubr.f32.mxu0 0.0
      %612 = vmatmul.mubr.f32.gmra.mrb[0].mxu0 %v388
      %v613 = vpop.f32.mrb[0].mxu0
      %v614 = vadd.f32 0.0, %v613
      %v615 = vpop.f32.mrb[0].mxu0
      %616 = vmatprep.mubr.f32.mxu0 0.0
      %617 = vmatmul.mubr.f32.gmra.mrb[0].mxu0 %v391
      %v618 = vpop.f32.mrb[0].mxu0
      %v619 = vadd.f32 0.0, %v618
      %v620 = vpop.f32.mrb[0].mxu0
      %621 = vdwg.mxu0
      %v622 = vld [vmem:[%s251] sm:$0x1]
      %v624 = vlaneseq
      %v625 = vshrl.u32 %v624, 7
      %v626 = vsub.s32 0, %v625
      %v627 = vrot.slane %v622, %v626
      %v629 = vmul.f32 %v464, %v627
      %v630 = vmul.f32 %v469, %v627
      %v631 = vmul.f32 %v474, %v627
      %v632 = vmul.f32 %v479, %v627
      %v633 = vmul.f32 %v484, %v627
      %v634 = vmul.f32 %v489, %v627
      %v635 = vmul.f32 %v494, %v627
      %v636 = vmul.f32 %v499, %v627
      %v637 = vmul.f32 %v504, %v627
      %v638 = vmul.f32 %v509, %v627
      %v639 = vmul.f32 %v514, %v627
      %v640 = vmul.f32 %v519, %v627
      %v641 = vmul.f32 %v524, %v627
      %v642 = vmul.f32 %v529, %v627
      %v643 = vmul.f32 %v534, %v627
      %v644 = vmul.f32 %v539, %v627
      %v645 = vmul.f32 %v544, %v627
      %v646 = vmul.f32 %v549, %v627
      %v647 = vmul.f32 %v554, %v627
      %v648 = vmul.f32 %v559, %v627
      %v649 = vmul.f32 %v564, %v627
      %v650 = vmul.f32 %v569, %v627
      %v651 = vmul.f32 %v574, %v627
      %v652 = vmul.f32 %v579, %v627
      %v653 = vmul.f32 %v584, %v627
      %v654 = vmul.f32 %v589, %v627
      %v655 = vmul.f32 %v594, %v627
      %v656 = vmul.f32 %v599, %v627
      %v657 = vmul.f32 %v604, %v627
      %v658 = vmul.f32 %v609, %v627
      %v659 = vmul.f32 %v614, %v627
      %v660 = vmul.f32 %v619, %v627
      %v661 = vld [vmem:[%s254] sm:$0x1]
      %v663 = vlaneseq
      %v664 = vshrl.u32 %v663, 7
      %v665 = vsub.s32 0, %v664
      %v666 = vrot.slane %v661, %v665
      %v668 = vadd.f32 %v629, %v666
      %v669 = vadd.f32 %v630, %v666
      %v670 = vadd.f32 %v631, %v666
      %v671 = vadd.f32 %v632, %v666
      %v672 = vadd.f32 %v633, %v666
      %v673 = vadd.f32 %v634, %v666
      %v674 = vadd.f32 %v635, %v666
      %v675 = vadd.f32 %v636, %v666
      %v676 = vadd.f32 %v637, %v666
      %v677 = vadd.f32 %v638, %v666
      %v678 = vadd.f32 %v639, %v666
      %v679 = vadd.f32 %v640, %v666
      %v680 = vadd.f32 %v641, %v666
      %v681 = vadd.f32 %v642, %v666
      %v682 = vadd.f32 %v643, %v666
      %v683 = vadd.f32 %v644, %v666
      %v684 = vadd.f32 %v645, %v666
      %v685 = vadd.f32 %v646, %v666
      %v686 = vadd.f32 %v647, %v666
      %v687 = vadd.f32 %v648, %v666
      %v688 = vadd.f32 %v649, %v666
      %v689 = vadd.f32 %v650, %v666
      %v690 = vadd.f32 %v651, %v666
      %v691 = vadd.f32 %v652, %v666
      %v692 = vadd.f32 %v653, %v666
      %v693 = vadd.f32 %v654, %v666
      %v694 = vadd.f32 %v655, %v666
      %v695 = vadd.f32 %v656, %v666
      %v696 = vadd.f32 %v657, %v666
      %v697 = vadd.f32 %v658, %v666
      %v698 = vadd.f32 %v659, %v666
      %v699 = vadd.f32 %v660, %v666
      %v700 = vsub.f32 0.0, %v668
      %v701 = vsub.f32 0.0, %v669
      %v702 = vsub.f32 0.0, %v670
      %v703 = vsub.f32 0.0, %v671
      %v704 = vsub.f32 0.0, %v672
      %v705 = vsub.f32 0.0, %v673
      %v706 = vsub.f32 0.0, %v674
      %v707 = vsub.f32 0.0, %v675
      %v708 = vsub.f32 0.0, %v676
      %v709 = vsub.f32 0.0, %v677
      %v710 = vsub.f32 0.0, %v678
      %v711 = vsub.f32 0.0, %v679
      %v712 = vsub.f32 0.0, %v680
      %v713 = vsub.f32 0.0, %v681
      %v714 = vsub.f32 0.0, %v682
      %v715 = vsub.f32 0.0, %v683
      %v716 = vsub.f32 0.0, %v684
      %v717 = vsub.f32 0.0, %v685
      %v718 = vsub.f32 0.0, %v686
      %v719 = vsub.f32 0.0, %v687
      %v720 = vsub.f32 0.0, %v688
      %v721 = vsub.f32 0.0, %v689
      %v722 = vsub.f32 0.0, %v690
      %v723 = vsub.f32 0.0, %v691
      %v724 = vsub.f32 0.0, %v692
      %v725 = vsub.f32 0.0, %v693
      %v726 = vsub.f32 0.0, %v694
      %v727 = vsub.f32 0.0, %v695
      %v728 = vsub.f32 0.0, %v696
      %v729 = vsub.f32 0.0, %v697
      %v730 = vsub.f32 0.0, %v698
      %v731 = vsub.f32 0.0, %v699
      %v732 = vmul.f32 %v700, 1.442695
      %v733 = vpow.pop %v732
      %v734 = vmul.f32 %v701, 1.442695
      %v735 = vpow.pop %v734
      %v736 = vmul.f32 %v702, 1.442695
      %v737 = vpow.pop %v736
      %v738 = vmul.f32 %v703, 1.442695
      %v739 = vpow.pop %v738
      %v740 = vmul.f32 %v704, 1.442695
      %v741 = vpow.pop %v740
      %v742 = vmul.f32 %v705, 1.442695
      %v743 = vpow.pop %v742
      %v744 = vmul.f32 %v706, 1.442695
      %v745 = vpow.pop %v744
      %v746 = vmul.f32 %v707, 1.442695
      %v747 = vpow.pop %v746
      %v748 = vmul.f32 %v708, 1.442695
      %v749 = vpow.pop %v748
      %v750 = vmul.f32 %v709, 1.442695
      %v751 = vpow.pop %v750
      %v752 = vmul.f32 %v710, 1.442695
      %v753 = vpow.pop %v752
      %v754 = vmul.f32 %v711, 1.442695
      %v755 = vpow.pop %v754
      %v756 = vmul.f32 %v712, 1.442695
      %v757 = vpow.pop %v756
      %v758 = vmul.f32 %v713, 1.442695
      %v759 = vpow.pop %v758
      %v760 = vmul.f32 %v714, 1.442695
      %v761 = vpow.pop %v760
      %v762 = vmul.f32 %v715, 1.442695
      %v763 = vpow.pop %v762
      %v764 = vmul.f32 %v716, 1.442695
      %v765 = vpow.pop %v764
      %v766 = vmul.f32 %v717, 1.442695
      %v767 = vpow.pop %v766
      %v768 = vmul.f32 %v718, 1.442695
      %v769 = vpow.pop %v768
      %v770 = vmul.f32 %v719, 1.442695
      %v771 = vpow.pop %v770
      %v772 = vmul.f32 %v720, 1.442695
      %v773 = vpow.pop %v772
      %v774 = vmul.f32 %v721, 1.442695
      %v775 = vpow.pop %v774
      %v776 = vmul.f32 %v722, 1.442695
      %v777 = vpow.pop %v776
      %v778 = vmul.f32 %v723, 1.442695
      %v779 = vpow.pop %v778
      %v780 = vmul.f32 %v724, 1.442695
      %v781 = vpow.pop %v780
      %v782 = vmul.f32 %v725, 1.442695
      %v783 = vpow.pop %v782
      %v784 = vmul.f32 %v726, 1.442695
      %v785 = vpow.pop %v784
      %v786 = vmul.f32 %v727, 1.442695
      %v787 = vpow.pop %v786
      %v788 = vmul.f32 %v728, 1.442695
      %v789 = vpow.pop %v788
      %v790 = vmul.f32 %v729, 1.442695
      %v791 = vpow.pop %v790
      %v792 = vmul.f32 %v730, 1.442695
      %v793 = vpow.pop %v792
      %v794 = vmul.f32 %v731, 1.442695
      %v795 = vpow.pop %v794
      %v796 = vadd.f32 %v733, 1.0
      %v797 = vadd.f32 %v735, 1.0
      %v798 = vadd.f32 %v737, 1.0
      %v799 = vadd.f32 %v739, 1.0
      %v800 = vadd.f32 %v741, 1.0
      %v801 = vadd.f32 %v743, 1.0
      %v802 = vadd.f32 %v745, 1.0
      %v803 = vadd.f32 %v747, 1.0
      %v804 = vadd.f32 %v749, 1.0
      %v805 = vadd.f32 %v751, 1.0
      %v806 = vadd.f32 %v753, 1.0
      %v807 = vadd.f32 %v755, 1.0
      %v808 = vadd.f32 %v757, 1.0
      %v809 = vadd.f32 %v759, 1.0
      %v810 = vadd.f32 %v761, 1.0
      %v811 = vadd.f32 %v763, 1.0
      %v812 = vadd.f32 %v765, 1.0
      %v813 = vadd.f32 %v767, 1.0
      %v814 = vadd.f32 %v769, 1.0
      %v815 = vadd.f32 %v771, 1.0
      %v816 = vadd.f32 %v773, 1.0
      %v817 = vadd.f32 %v775, 1.0
      %v818 = vadd.f32 %v777, 1.0
      %v819 = vadd.f32 %v779, 1.0
      %v820 = vadd.f32 %v781, 1.0
      %v821 = vadd.f32 %v783, 1.0
      %v822 = vadd.f32 %v785, 1.0
      %v823 = vadd.f32 %v787, 1.0
      %v824 = vadd.f32 %v789, 1.0
      %v825 = vadd.f32 %v791, 1.0
      %v826 = vadd.f32 %v793, 1.0
      %v827 = vadd.f32 %v795, 1.0
      %v828 = vrcp.pop %v796
      %v829 = vrcp.pop %v797
      %v830 = vrcp.pop %v798
      %v831 = vrcp.pop %v799
      %v832 = vrcp.pop %v800
      %v833 = vrcp.pop %v801
      %v834 = vrcp.pop %v802
      %v835 = vrcp.pop %v803
      %v836 = vrcp.pop %v804
      %v837 = vrcp.pop %v805
      %v838 = vrcp.pop %v806
      %v839 = vrcp.pop %v807
      %v840 = vrcp.pop %v808
      %v841 = vrcp.pop %v809
      %v842 = vrcp.pop %v810
      %v843 = vrcp.pop %v811
      %v844 = vrcp.pop %v812
      %v845 = vrcp.pop %v813
      %v846 = vrcp.pop %v814
      %v847 = vrcp.pop %v815
      %v848 = vrcp.pop %v816
      %v849 = vrcp.pop %v817
      %v850 = vrcp.pop %v818
      %v851 = vrcp.pop %v819
      %v852 = vrcp.pop %v820
      %v853 = vrcp.pop %v821
      %v854 = vrcp.pop %v822
      %v855 = vrcp.pop %v823
      %v856 = vrcp.pop %v824
      %v857 = vrcp.pop %v825
      %v858 = vrcp.pop %v826
      %v859 = vrcp.pop %v827
      %v860 = vmul.f32 %v668, %v828
      %v861 = vmul.f32 %v669, %v829
      %v862 = vmul.f32 %v670, %v830
      %v863 = vmul.f32 %v671, %v831
      %v864 = vmul.f32 %v672, %v832
      %v865 = vmul.f32 %v673, %v833
      %v866 = vmul.f32 %v674, %v834
      %v867 = vmul.f32 %v675, %v835
      %v868 = vmul.f32 %v676, %v836
      %v869 = vmul.f32 %v677, %v837
      %v870 = vmul.f32 %v678, %v838
      %v871 = vmul.f32 %v679, %v839
      %v872 = vmul.f32 %v680, %v840
      %v873 = vmul.f32 %v681, %v841
      %v874 = vmul.f32 %v682, %v842
      %v875 = vmul.f32 %v683, %v843
      %v876 = vmul.f32 %v684, %v844
      %v877 = vmul.f32 %v685, %v845
      %v878 = vmul.f32 %v686, %v846
      %v879 = vmul.f32 %v687, %v847
      %v880 = vmul.f32 %v688, %v848
      %v881 = vmul.f32 %v689, %v849
      %v882 = vmul.f32 %v690, %v850
      %v883 = vmul.f32 %v691, %v851
      %v884 = vmul.f32 %v692, %v852
      %v885 = vmul.f32 %v693, %v853
      %v886 = vmul.f32 %v694, %v854
      %v887 = vmul.f32 %v695, %v855
      %v888 = vmul.f32 %v696, %v856
      %v889 = vmul.f32 %v697, %v857
      %v890 = vmul.f32 %v698, %v858
      %v891 = vmul.f32 %v699, %v859
      %892 = vst.msk [vmem:[%s262] sm:$0xff] %vm296, %v860
      %893 = vst.msk [vmem:[%s262 + $0x8] sm:$0xff] %vm296, %v861
      %894 = vst.msk [vmem:[%s262 + $0x10] sm:$0xff] %vm296, %v862
      %895 = vst.msk [vmem:[%s262 + $0x18] sm:$0xff] %vm296, %v863
      %896 = vst.msk [vmem:[%s262 + $0x20] sm:$0xff] %vm296, %v864
      %897 = vst.msk [vmem:[%s262 + $0x28] sm:$0xff] %vm296, %v865
      %898 = vst.msk [vmem:[%s262 + $0x30] sm:$0xff] %vm296, %v866
      %899 = vst.msk [vmem:[%s262 + $0x38] sm:$0xff] %vm296, %v867
      %900 = vst.msk [vmem:[%s262 + $0x40] sm:$0xff] %vm296, %v868
      %901 = vst.msk [vmem:[%s262 + $0x48] sm:$0xff] %vm296, %v869
      %902 = vst.msk [vmem:[%s262 + $0x50] sm:$0xff] %vm296, %v870
      %903 = vst.msk [vmem:[%s262 + $0x58] sm:$0xff] %vm296, %v871
      %904 = vst.msk [vmem:[%s262 + $0x60] sm:$0xff] %vm296, %v872
      %905 = vst.msk [vmem:[%s262 + $0x68] sm:$0xff] %vm296, %v873
      %906 = vst.msk [vmem:[%s262 + $0x70] sm:$0xff] %vm296, %v874
      %907 = vst.msk [vmem:[%s262 + $0x78] sm:$0xff] %vm296, %v875
      %908 = vst.msk [vmem:[%s262 + $0x80] sm:$0xff] %vm296, %v876
      %909 = vst.msk [vmem:[%s262 + $0x88] sm:$0xff] %vm296, %v877
      %910 = vst.msk [vmem:[%s262 + $0x90] sm:$0xff] %vm296, %v878
      %911 = vst.msk [vmem:[%s262 + $0x98] sm:$0xff] %vm296, %v879
      %912 = vst.msk [vmem:[%s262 + $0xa0] sm:$0xff] %vm296, %v880
      %913 = vst.msk [vmem:[%s262 + $0xa8] sm:$0xff] %vm296, %v881
      %914 = vst.msk [vmem:[%s262 + $0xb0] sm:$0xff] %vm296, %v882
      %915 = vst.msk [vmem:[%s262 + $0xb8] sm:$0xff] %vm296, %v883
      %916 = vst.msk [vmem:[%s262 + $0xc0] sm:$0xff] %vm296, %v884
      %917 = vst.msk [vmem:[%s262 + $0xc8] sm:$0xff] %vm296, %v885
      %918 = vst.msk [vmem:[%s262 + $0xd0] sm:$0xff] %vm296, %v886
      %919 = vst.msk [vmem:[%s262 + $0xd8] sm:$0xff] %vm296, %v887
      %920 = vst.msk [vmem:[%s262 + $0xe0] sm:$0xff] %vm296, %v888
      %921 = vst.msk [vmem:[%s262 + $0xe8] sm:$0xff] %vm296, %v889
      %922 = vst.msk [vmem:[%s262 + $0xf0] sm:$0xff] %vm296, %v890
      %923 = vst.msk [vmem:[%s262 + $0xf8] sm:$0xff] %vm296, %v891
      %p924 = scmp.lt.s32.totalorder %s19, 1
      %s925 = scalar_select %p924, %s19, 1
      %p926 = scmp.lt.s32.totalorder %s20, 0
      %s927 = scalar_select %p926, %s20, 0
      %s928 = smul.addr %s925, 32
      %s929 = sadd.s32 %s927, %s928
      %s930 = smul.addr %s929, 8
      %s931 = scalar_lea.vmem %s4, %s930
      // Predicated region
      $region37: #{tpu_custom_call.1} parent=35 // pred_check
        %p932 = pneg %p151
      $region38: #{tpu_custom_call.1} parent=35 // pred_check_branch
        %934 = sbr.rel (%p932) target = $region40
      $region39: #{tpu_custom_call.1} parent=35 // pred_region
        _
      $region40: #{tpu_custom_call.1} parent=35 // pred_fallthru
        _
    $region36: #{tpu_custom_call.1} parent=5 // pred_fallthru
      _
    %p935 = scmp.le.s32.totalorder 2, %s10
    // Predicated region
    $region41: #{tpu_custom_call.1} parent=5 // pred_check
      %p936 = pneg %p935
    $region42: #{tpu_custom_call.1} parent=5 // pred_check_branch
      %938 = sbr.rel (%p936) target = $region44
    $region43: #{tpu_custom_call.1} parent=5 // pred_region
      %s939 = ssub.s32 %s10, 2
      // Predicated region
      $region45: #{tpu_custom_call.1} parent=43 // pred_check
        %p940 = pneg %p157
      $region46: #{tpu_custom_call.1} parent=43 // pred_check_branch
        %942 = sbr.rel (%p940) target = $region48
      $region47: #{tpu_custom_call.1} parent=43 // pred_region
        %p943 = scmp.lt.s32.totalorder %s21, 1
        %s944 = scalar_select %p943, %s21, 1
        %p945 = scmp.lt.s32.totalorder %s22, 0
        %s946 = scalar_select %p945, %s22, 0
        %s947 = smul.addr %s944, 32
        %s948 = sadd.s32 %s946, %s947
        %s949 = smul.addr %s948, 8
        %s950 = scalar_lea.vmem %s4, %s949
      $region48: #{tpu_custom_call.1} parent=43 // pred_fallthru
        _
    $region44: #{tpu_custom_call.1} parent=5 // pred_fallthru
      _
  $region6: #{tpu_custom_call.1} parent=0 // loop_footer
    %s14 = sadd.s32 1, %s10
  $region7: #{tpu_custom_call.1} parent=0 // loop_footer_branch
    %9 = sbr.rel target = $region3
  $region8: #{tpu_custom_call.1} parent=0 // loop_exit
    _

</llo_original>
